<compile_context>
chip_gen: v5e
topology: v5e:2x2
jax: 0.10.0
libtpu: 0.0.40
codegen_flags: <defaults>
</compile_context>

<pallas_src>
import numpy as np
import jax
import jax.numpy as jnp
from jax.experimental import pallas as pl
from jax.experimental.pallas import tpu as pltpu


def _cdiv(a, b):
    return -(-a // b)


def _round_up(a, b):
    return _cdiv(a, b) * b


def _round_down(a, b):
    return (a // b) * b


_SLAB_LANES = 1024                    # lane width of the small-weight slab
_TILE_BYTES = 4 * 1024 * 1024         # ~4 MiB per DMA tile
_LARGE_MIN_ELEMS = 32 * 1024          # below this, a copy beats a kernel launch
_VMEM_LIMIT_BYTES = 32 * 1024 * 1024  # explicit budget, safe on v5e/v6e/v7x


def _sublane_packing(dtype):
    """Native sublane packing: 8 (32-bit), 16 (16-bit), 32 (8-bit)."""
    return 8 * max(1, 4 // jnp.dtype(dtype).itemsize)


def _largest_lane_divisor(n):
    for q in (1024, 512, 256, 128):
        if n % q == 0:
            return q
    return None


def _row_ssq_kernel(w_ref, out_ref):
    """w_ref: (TR, Q) native dtype  ->  out_ref: (TR, 1) f32 per-row sum of squares."""
    x = w_ref[...].astype(jnp.float32)          # cast on the VPU; HBM stays narrow
    out_ref[...] = jnp.sum(x * x, axis=-1, keepdims=True)


def _row_ssq(x2d, tile_rows):
    rows, q = x2d.shape
    return pl.pallas_call(
        _row_ssq_kernel,
        out_shape=jax.ShapeDtypeStruct((rows, 1), jnp.float32),
        grid=(_cdiv(rows, tile_rows),),
        in_specs=[pl.BlockSpec((tile_rows, q), lambda k: (k, 0))],
        out_specs=pl.BlockSpec((tile_rows, 1), lambda k: (k, 0)),
        compiler_params=pltpu.CompilerParams(
            dimension_semantics=("parallel",),    # independent steps; megacore on v7x
            vmem_limit_bytes=_VMEM_LIMIT_BYTES,
        ),
    )(x2d)


def _tile_rows_for(q, dtype, max_rows):
    """~4 MiB tiles, rounded to the dtype's sublane packing, clamped to the array."""
    pack = _sublane_packing(dtype)
    itemsize = jnp.dtype(dtype).itemsize
    target = max(pack, _round_down(_TILE_BYTES // (q * itemsize), pack))
    return max(pack, min(target, _round_down(max_rows, pack)))


def _weight_ssq_direct(w):
    """Sum of squares of one large weight, streamed in place (no repack copy)."""
    n = int(w.size)
    q = _largest_lane_divisor(n)
    rows = n // q
    x2d = jnp.reshape(w, (rows, q))     # contiguous reshape: no HBM repack
    tile_rows = _tile_rows_for(q, w.dtype, rows)
    return jnp.sum(_row_ssq(x2d, tile_rows))


def _slab_ssq(entries):
    """Sum of squares for the tail of small / irregular weights.

    entries: list of (original_index, array).  Returns [(original_index, ssq)].
    Weights are packed per dtype into a (rows, 1024) slab; zero padding is
    neutral for p = 2.  The per-row kernel output is segment-summed in JAX.
    """
    results = []
    if not entries:
        return results

    groups = {}
    for i, w in entries:
        dt = w.dtype if jnp.issubdtype(w.dtype, jnp.floating) else jnp.dtype(jnp.float32)
        groups.setdefault(jnp.dtype(dt), []).append((i, w))

    for dt, group in groups.items():
        pack = _sublane_packing(dt)
        pieces, id_pieces, orig_idx = [], [], []
        total_rows = 0
        for local, (i, w) in enumerate(group):
            flat = jnp.ravel(w).astype(dt)
            n = int(flat.shape[0])
            rows = _cdiv(n, _SLAB_LANES)
            pad = rows * _SLAB_LANES - n
            pieces.append(flat)
            if pad:
                pieces.append(jnp.zeros((pad,), dt))
            id_pieces.append(np.full((rows,), local, np.int32))
            orig_idx.append(i)
            total_rows += rows
        rows_pad = _round_up(total_rows, pack)
        if rows_pad > total_rows:
            # Sentinel id == len(group): pad rows land in a segment that is
            # sliced off below (and they are all-zero anyway).
            pieces.append(jnp.zeros(((rows_pad - total_rows) * _SLAB_LANES,), dt))
            id_pieces.append(np.full((rows_pad - total_rows,), len(group), np.int32))

        slab = jnp.concatenate(pieces).reshape(rows_pad, _SLAB_LANES)
        row_ids = jnp.asarray(np.concatenate(id_pieces))

        tile_rows = _tile_rows_for(_SLAB_LANES, dt, rows_pad)
        row_ssq = _row_ssq(slab, tile_rows)[:, 0]
        seg = jax.ops.segment_sum(row_ssq, row_ids,
                                  num_segments=len(group) + 1,
                                  indices_are_sorted=True)
        for local, i in enumerate(orig_idx):
            results.append((i, seg[local]))
    return results


def regularization_loss(weights, weight_decay, p=2):
    """weights: list of jnp arrays (the model's *weight* params).
    Returns weight_decay * sum_i ||w_i||_p  (only p == 2 is supported)."""
    if p != 2:
        # the sum-of-squares decomposition / zero padding is only valid for p = 2
        raise NotImplementedError("Pallas Regularization kernel supports p=2 only")
    if weight_decay <= 0:
        raise ValueError("param weight_decay can not <= 0")

    weights = [w for w in weights if int(w.size) > 0]
    if not weights:
        return jnp.asarray(0.0, jnp.float32)

    ssq = [None] * len(weights)
    slab_entries = []
    for i, w in enumerate(weights):
        n = int(w.size)
        q = _largest_lane_divisor(n)
        if (n >= _LARGE_MIN_ELEMS and q is not None
                and jnp.issubdtype(w.dtype, jnp.floating)):
            ssq[i] = _weight_ssq_direct(w)       # streamed in place, no repack
        else:
            slab_entries.append((i, w))          # tiny / irregular -> packed slab
    for i, s in _slab_ssq(slab_entries):
        ssq[i] = s

    norms = jnp.sqrt(jnp.stack(ssq))             # ||w_i||_2, one per weight
    return jnp.asarray(weight_decay, jnp.float32) * jnp.sum(norms)


def make_synthetic_model_params(key):
    """Deterministic stand-in for `model.named_parameters()` at small shapes.
    Only entries whose name contains 'weight' participate (biases excluded),
    matching Regularization.get_weight."""
    keys = jax.random.split(key, 7)
    params = [
        ("conv1.weight", jax.random.normal(keys[0], (4, 4, 3, 3), jnp.float32) * 0.1),
        ("conv1.bias",   jax.random.normal(keys[1], (4,), jnp.float32) * 0.1),
        ("conv2.weight", jax.random.normal(keys[2], (16, 4, 3, 3), jnp.float32) * 0.1),
        ("conv2.bias",   jax.random.normal(keys[3], (16,), jnp.float32) * 0.1),
        ("fc1.weight",   jax.random.normal(keys[4], (64, 512), jnp.float32) * 0.05),
        ("fc1.bias",     jax.random.normal(keys[5], (512,), jnp.float32) * 0.1),
        ("fc2.weight",   jax.random.normal(keys[6], (32, 16), jnp.float32) * 0.1),
    ]
    return params


if __name__ == "__main__":
    key = jax.random.PRNGKey(0)
    named_params = make_synthetic_model_params(key)

    # Regularization.get_weight: keep only params whose name contains "weight"
    weight_list = [p for (name, p) in named_params if "weight" in name]
    weight_decay = 1e-3

    loss = regularization_loss(weight_list, weight_decay)
    loss = jax.block_until_ready(loss)

    # pure-JAX reference check of the forward semantics
    ref = weight_decay * sum(jnp.linalg.norm(jnp.ravel(w)) for w in weight_list)
    assert jnp.allclose(loss, ref, rtol=2e-5, atol=1e-6), (loss, ref)

    print("KERNEL_OK")
</pallas_src>

<mosaic_0001>
module attributes {stable_mosaic.version = 11 : i64} {
  func.func @_row_ssq_kernel(%arg0: i32, %arg1: memref<32x1024xf32, #tpu.memory_space<vmem>>, %arg2: memref<32x1xf32, #tpu.memory_space<vmem>>) attributes {dimension_semantics = [#tpu.dimension_semantics<parallel>], iteration_bounds = array<i64: 1>, scalar_prefetch = 0 : i64, scratch_operands = 0 : i64, tpu.core_type = #tpu.core_type<tc>, window_params = [{transform_indices = @transform_0, window_bounds = array<i64: 32, 1024>}, {transform_indices = @transform_1, window_bounds = array<i64: 32, 1>}]} {
    %c0 = arith.constant 0 : index
    %c0_0 = arith.constant 0 : index
    %0 = vector.load %arg1[%c0, %c0_0] : memref<32x1024xf32, #tpu.memory_space<vmem>>, vector<32x1024xf32>
    %1 = arith.mulf %0, %0 : vector<32x1024xf32>
    %cst = arith.constant dense<0.000000e+00> : vector<32xf32>
    %2 = vector.multi_reduction <add>, %1, %cst [1] : vector<32x1024xf32> to vector<32xf32>
    %3 = vector.shape_cast %2 : vector<32xf32> to vector<32x1xf32>
    %c0_1 = arith.constant 0 : index
    %c0_2 = arith.constant 0 : index
    %4 = vector.load %arg2[%c0_1, %c0_2] : memref<32x1xf32, #tpu.memory_space<vmem>>, vector<32x1xf32>
    tpu.vector_store %arg2[%c0_1, %c0_2], %3 {strides = array<i32>} : memref<32x1xf32, #tpu.memory_space<vmem>>, vector<32x1xf32>,
    return
  }
  func.func @transform_0(%arg0: i32) -> (i32, i32) {
    %c0_i32 = arith.constant 0 : i32
    %c0_i32_0 = arith.constant 0 : i32
    return %arg0, %c0_i32 : i32, i32
  }
  func.func @transform_1(%arg0: i32) -> (i32, i32) {
    %c0_i32 = arith.constant 0 : i32
    %c0_i32_0 = arith.constant 0 : i32
    return %arg0, %c0_i32 : i32, i32
  }
}

</mosaic_0001>

<llo_original>
// kernel: tpu_custom_call.1
$region0: #{tpu_custom_call.1}
  #allocation0 [shape = 'u32[]', space=smem, size = 0x4, offset = 0x4, fixed_abs, tag = 'smem constant byte address 0x4 - core index']
  #allocation1 [shape = 'u32[72,128]{1,0:T(1,128)}', space=vmem, size = 0x9000, scoped, tag = 'internal scratch']
  %s0 = inlined_call_operand.hbm [shape: f32[32,1024], index: 0, kind: input, shape index: {}]
  %s1 = inlined_call_operand.vmem [shape: f32[32,1], index: 1, kind: output, shape index: {}]
  %s2 = sld [smem:[#allocation0]]
  $region18: #{tpu_custom_call.1} parent=0
    _
  %s4 = ssub.s32 1, %s2
  %s5 = scalar_select 0, %s4, %s2
  $region1: #{tpu_custom_call.1} parent=0
    #allocation2 [shape = 'u8[131072]{0}', space=vmem, size = 0x20000, scoped, tag = 'input window, operand 0, single buffered']
    #allocation3 [shape = 's32[1]{0}', space=sflag, size = 0x4, scoped, tag = 'scoped memory for tpu_custom_call.1']
    %6 = vsyncpa [#allocation3], 0
    // Predicated region
    $region2: #{tpu_custom_call.1} parent=1 // pred_check
      _
    $region3: #{tpu_custom_call.1} parent=1 // pred_check_branch
      %8 = sbr.rel (0) target = $region5
    $region4: #{tpu_custom_call.1} parent=1 // pred_region
      %10 = vsyncadd [#allocation3], 0
      %s11 = sshll.u32 %s0, 4
      %s12 = int_to_ptr.hbm [resolvable:$true] %s11
      %s13 = sshll.u32 [#allocation2], 4
      %s14 = int_to_ptr.vmem [resolvable:$true] %s13
      %19 = dma.hbm_to_vmem [thread:$0]  %s12, 4096, %s14, [#allocation3], 1024, 1024, 64
    $region5: #{tpu_custom_call.1} parent=1 // pred_fallthru
      _
    // Predicated region
    $region6: #{tpu_custom_call.1} parent=1 // pred_check
      _
    $region7: #{tpu_custom_call.1} parent=1 // pred_check_branch
      %21 = sbr.rel (0) target = $region9
    $region8: #{tpu_custom_call.1} parent=1 // pred_region
      %23 = dma.done [#allocation3], 4096
    $region9: #{tpu_custom_call.1} parent=1 // pred_fallthru
      _
    %v24 = vld [vmem:[#allocation2] sm:$0xff]
    %v25 = vld [vmem:[#allocation2 + $0x8] sm:$0xff]
    %v26 = vld [vmem:[#allocation2 + $0x10] sm:$0xff]
    %v27 = vld [vmem:[#allocation2 + $0x18] sm:$0xff]
    %v28 = vld [vmem:[#allocation2 + $0x20] sm:$0xff]
    %v29 = vld [vmem:[#allocation2 + $0x28] sm:$0xff]
    %v30 = vld [vmem:[#allocation2 + $0x30] sm:$0xff]
    %v31 = vld [vmem:[#allocation2 + $0x38] sm:$0xff]
    %v32 = vld [vmem:[#allocation2 + $0x40] sm:$0xff]
    %v33 = vld [vmem:[#allocation2 + $0x48] sm:$0xff]
    %v34 = vld [vmem:[#allocation2 + $0x50] sm:$0xff]
    %v35 = vld [vmem:[#allocation2 + $0x58] sm:$0xff]
    %v36 = vld [vmem:[#allocation2 + $0x60] sm:$0xff]
    %v37 = vld [vmem:[#allocation2 + $0x68] sm:$0xff]
    %v38 = vld [vmem:[#allocation2 + $0x70] sm:$0xff]
    %v39 = vld [vmem:[#allocation2 + $0x78] sm:$0xff]
    %v40 = vld [vmem:[#allocation2 + $0x80] sm:$0xff]
    %v41 = vld [vmem:[#allocation2 + $0x88] sm:$0xff]
    %v42 = vld [vmem:[#allocation2 + $0x90] sm:$0xff]
    %v43 = vld [vmem:[#allocation2 + $0x98] sm:$0xff]
    %v44 = vld [vmem:[#allocation2 + $0xa0] sm:$0xff]
    %v45 = vld [vmem:[#allocation2 + $0xa8] sm:$0xff]
    %v46 = vld [vmem:[#allocation2 + $0xb0] sm:$0xff]
    %v47 = vld [vmem:[#allocation2 + $0xb8] sm:$0xff]
    %v48 = vld [vmem:[#allocation2 + $0xc0] sm:$0xff]
    %v49 = vld [vmem:[#allocation2 + $0xc8] sm:$0xff]
    %v50 = vld [vmem:[#allocation2 + $0xd0] sm:$0xff]
    %v51 = vld [vmem:[#allocation2 + $0xd8] sm:$0xff]
    %v52 = vld [vmem:[#allocation2 + $0xe0] sm:$0xff]
    %v53 = vld [vmem:[#allocation2 + $0xe8] sm:$0xff]
    %v54 = vld [vmem:[#allocation2 + $0xf0] sm:$0xff]
    %v55 = vld [vmem:[#allocation2 + $0xf8] sm:$0xff]
    %v56 = vmul.f32 %v24, %v24
    %v57 = vmul.f32 %v25, %v25
    %v58 = vmul.f32 %v26, %v26
    %v59 = vmul.f32 %v27, %v27
    %v60 = vmul.f32 %v28, %v28
    %v61 = vmul.f32 %v29, %v29
    %v62 = vmul.f32 %v30, %v30
    %v63 = vmul.f32 %v31, %v31
    %v64 = vmul.f32 %v32, %v32
    %v65 = vmul.f32 %v33, %v33
    %v66 = vmul.f32 %v34, %v34
    %v67 = vmul.f32 %v35, %v35
    %v68 = vmul.f32 %v36, %v36
    %v69 = vmul.f32 %v37, %v37
    %v70 = vmul.f32 %v38, %v38
    %v71 = vmul.f32 %v39, %v39
    %v72 = vmul.f32 %v40, %v40
    %v73 = vmul.f32 %v41, %v41
    %v74 = vmul.f32 %v42, %v42
    %v75 = vmul.f32 %v43, %v43
    %v76 = vmul.f32 %v44, %v44
    %v77 = vmul.f32 %v45, %v45
    %v78 = vmul.f32 %v46, %v46
    %v79 = vmul.f32 %v47, %v47
    %v80 = vmul.f32 %v48, %v48
    %v81 = vmul.f32 %v49, %v49
    %v82 = vmul.f32 %v50, %v50
    %v83 = vmul.f32 %v51, %v51
    %v84 = vmul.f32 %v52, %v52
    %v85 = vmul.f32 %v53, %v53
    %v86 = vmul.f32 %v54, %v54
    %v87 = vmul.f32 %v55, %v55
    %v88 = vadd.f32 %v56, %v57
    %v89 = vadd.f32 %v88, %v58
    %v90 = vadd.f32 %v89, %v59
    %v91 = vadd.f32 %v90, %v60
    %v92 = vadd.f32 %v91, %v61
    %v93 = vadd.f32 %v92, %v62
    %v94 = vadd.f32 %v93, %v63
    %95 = vadd.xlane.f32.xlu0 %v94
    %v96 = vpop.xlane.xlu0 %95
    %v97 = vadd.f32 %v64, %v65
    %v98 = vadd.f32 %v97, %v66
    %v99 = vadd.f32 %v98, %v67
    %v100 = vadd.f32 %v99, %v68
    %v101 = vadd.f32 %v100, %v69
    %v102 = vadd.f32 %v101, %v70
    %v103 = vadd.f32 %v102, %v71
    %104 = vadd.xlane.f32.xlu0 %v103
    %v105 = vpop.xlane.xlu0 %104
    %v106 = vadd.f32 %v72, %v73
    %v107 = vadd.f32 %v106, %v74
    %v108 = vadd.f32 %v107, %v75
    %v109 = vadd.f32 %v108, %v76
    %v110 = vadd.f32 %v109, %v77
    %v111 = vadd.f32 %v110, %v78
    %v112 = vadd.f32 %v111, %v79
    %113 = vadd.xlane.f32.xlu0 %v112
    %v114 = vpop.xlane.xlu0 %113
    %v115 = vadd.f32 %v80, %v81
    %v116 = vadd.f32 %v115, %v82
    %v117 = vadd.f32 %v116, %v83
    %v118 = vadd.f32 %v117, %v84
    %v119 = vadd.f32 %v118, %v85
    %v120 = vadd.f32 %v119, %v86
    %v121 = vadd.f32 %v120, %v87
    %122 = vadd.xlane.f32.xlu0 %v121
    %v123 = vpop.xlane.xlu0 %122
    %vm124 = vcmask 7168
    %125 = vst.msk [vmem:[%s1] sm:$0xff] %vm124, %v96
    %126 = vst.msk [vmem:[%s1 + $0x8] sm:$0xff] %vm124, %v105
    %127 = vst.msk [vmem:[%s1 + $0x10] sm:$0xff] %vm124, %v114
    %128 = vst.msk [vmem:[%s1 + $0x18] sm:$0xff] %vm124, %v123
    // Predicated region
    $region10: #{tpu_custom_call.1} parent=1 // pred_check
      _
    $region11: #{tpu_custom_call.1} parent=1 // pred_check_branch
      %130 = sbr.rel (0) target = $region13
    $region12: #{tpu_custom_call.1} parent=1 // pred_region
      _
    $region13: #{tpu_custom_call.1} parent=1 // pred_fallthru
      _
    // Predicated region
    $region14: #{tpu_custom_call.1} parent=1 // pred_check
      _
    $region15: #{tpu_custom_call.1} parent=1 // pred_check_branch
      %132 = sbr.rel (0) target = $region17
    $region16: #{tpu_custom_call.1} parent=1 // pred_region
      _
    $region17: #{tpu_custom_call.1} parent=1 // pred_fallthru
      _
    %133 = vsyncpa [#allocation3], 1

</llo_original>
